<compile_context>
chip_gen: v7x
topology: tpu7x:2x2x1
jax: 0.10.0
libtpu: 0.0.40
codegen_flags: <defaults>
</compile_context>

<pallas_src>
import functools

import jax
import jax.numpy as jnp
from jax.experimental import pallas as pl
from jax.experimental.pallas import tpu as pltpu

_LANE = 128                        # default lane alignment; use 256 on v6e/v7x
_DEFAULT_VMEM = 64 * 1024 * 1024   # conservative fallback = v7x per-TC VMEM


def _round_up(x: int, m: int) -> int:
    return (x + m - 1) // m * m


def _cdiv(a: int, b: int) -> int:
    return (a + b - 1) // b


def _pad2d(a, rows: int, cols: int):
    pr, pc = rows - a.shape[0], cols - a.shape[1]
    if pr == 0 and pc == 0:
        return a
    return jnp.pad(a, ((0, pr), (0, pc)))


def _vmem_budget_bytes() -> int:
    """~85% of this chip's per-core VMEM (leaves compiler scratch headroom)."""
    cap = None
    try:
        cap = getattr(pltpu.get_tpu_info(), "vmem_capacity_bytes", None)
    except Exception:
        cap = None
    if not cap:
        cap = _DEFAULT_VMEM
    return int(cap * 0.85)


def encoder_kernel(x_ref, w1_ref, b1_ref, w2_ref, b2_ref, out_ref, acc_ref):
    """One (batch tile, hidden block) step of z = relu(x@W1 + b1) @ W2 + b2."""
    k = pl.program_id(1)

    @pl.when(k == 0)
    def _init():
        acc_ref[...] = jnp.zeros_like(acc_ref)

    # Hidden block: h = relu(x @ W1[:, blk] + b1[blk]); f32 MXU accumulation,
    # bias add + ReLU in f32 on the VPU (v5e has no bf16 VPU path).
    h = jnp.dot(x_ref[...], w1_ref[...], preferred_element_type=jnp.float32)
    h = jnp.maximum(h + b1_ref[...], 0.0)

    # Partial second matmul: acc += h @ W2[blk, :]. Cast h to the weight dtype
    # so bf16 deployments use the bf16 MXU path; accumulate in f32.
    acc_ref[...] += jnp.dot(h.astype(w2_ref.dtype), w2_ref[...],
                            preferred_element_type=jnp.float32)

    @pl.when(k == pl.num_programs(1) - 1)
    def _finalize():
        out_ref[...] = (acc_ref[...] + b2_ref[...]).astype(out_ref.dtype)


@functools.partial(jax.jit, static_argnames=("block_m", "lane_align"))
def encoder_forward(x, w1, b1, w2, b2, *, block_m: int = 512,
                    lane_align: int = _LANE):
    """Fused Encoder forward.

    x:  (B, input_size)
    w1: (input_size, hidden)   (PyTorch weight transposed to (in, out))
    b1: (1, hidden)
    w2: (hidden, latent)
    b2: (1, latent)
    """
    B, K = x.shape
    H = w1.shape[1]
    L = w2.shape[1]
    dtype = x.dtype
    dt_bytes = jnp.dtype(dtype).itemsize
    sublane = 16 if dt_bytes == 2 else 8

    budget = _vmem_budget_bytes()

    # Lane-dense hidden/latent (zero padding is exact: relu(0)=0 hidden lanes,
    # zero W2 rows/cols contribute nothing, padded output lanes sliced off).
    h_pad0 = _round_up(H, lane_align)
    l_pad = _round_up(L, lane_align)

    def weight_bytes(th, nbuf):
        # W1 block (K,th) + W2 block (th,l_pad) + b1 (1,th) + b2 (1,l_pad)
        return nbuf * (K * th + th * l_pad + th + l_pad) * dt_bytes

    # Hidden tiling: keep W1/W2 fully resident (single-buffered) while they
    # fit in ~1/3 of the VMEM budget; otherwise stream hidden blocks
    # (double-buffered) through an f32 accumulator on the innermost grid axis.
    h_tiles = 1
    while True:
        th = _round_up(_cdiv(h_pad0, h_tiles), lane_align)
        nbuf = 1 if h_tiles == 1 else 2
        if weight_bytes(th, nbuf) <= budget // 3 or th == lane_align:
            break
        h_tiles += 1
    h_pad = th * h_tiles
    resident = h_tiles == 1

    def footprint(tm):
        wbuf = 1 if resident else 2
        return (weight_bytes(th, wbuf)
                + 2 * tm * K * dt_bytes        # double-buffered x tiles
                + 2 * tm * l_pad * dt_bytes    # double-buffered out tiles
                + tm * l_pad * 4               # f32 accumulator scratch
                + tm * th * (4 + dt_bytes))    # f32 hidden + cast copy

    # Batch tiling: balance rows across ceil(B/block_m) tiles (minimal
    # padding), request >= 2 tiles for large B so both v7x TensorCores get
    # work, then shrink the tile until the footprint fits the VMEM budget.
    n_m = max(1, _cdiv(B, block_m))
    if n_m < 2 and B >= 128:
        n_m = 2
    tm = _round_up(_cdiv(B, n_m), sublane)
    while footprint(tm) > budget and tm > sublane:
        n_m *= 2
        tm = max(sublane, _round_up(_cdiv(B, n_m), sublane))
    m_pad = tm * n_m

    xp = _pad2d(x, m_pad, K)
    w1p = _pad2d(w1, K, h_pad)
    b1p = _pad2d(b1, 1, h_pad)
    w2p = _pad2d(w2, h_pad, l_pad)
    b2p = _pad2d(b2, 1, l_pad)

    def wspec(shape, imap, always_resident=False):
        # Constant index_map -> block stays resident; single-buffer it so it
        # costs 1x (not 2x) VMEM. When hidden is tiled, W1/b1/W2 blocks move
        # with k, so they keep default double-buffering to hide their DMA.
        if resident or always_resident:
            return pl.BlockSpec(shape, imap, pipeline_mode=pl.Buffered(1))
        return pl.BlockSpec(shape, imap)

    grid = (n_m, h_tiles)

    out = pl.pallas_call(
        encoder_kernel,
        out_shape=jax.ShapeDtypeStruct((m_pad, l_pad), dtype),
        grid=grid,
        in_specs=[
            # x: tiled along batch, full K per tile; block index is constant
            # across k, so it is not re-fetched during the hidden reduction.
            # TODO(synk): pipeline_mode=pl.Buffered(3) here if a profile shows
            # the x-tile DMA exposed in the small-hidden (mem-bound) regime.
            pl.BlockSpec((tm, K), lambda i, k: (i, 0)),
            wspec((K, th), lambda i, k: (0, k)),
            wspec((1, th), lambda i, k: (0, k)),
            wspec((th, l_pad), lambda i, k: (k, 0)),
            wspec((1, l_pad), lambda i, k: (0, 0), always_resident=True),
        ],
        # Lane-dense (multiple-of-128) output tile -> unmasked stores; constant
        # over the reduction axis k (accumulator pattern, finalized at last k).
        out_specs=pl.BlockSpec((tm, l_pad), lambda i, k: (i, 0)),
        scratch_shapes=[pltpu.VMEM((tm, l_pad), jnp.float32)],
        compiler_params=pltpu.CompilerParams(
            # Batch tiles independent; hidden axis is a reduction (last).
            # TODO(synk): switch axis 0 to pltpu.CORE_PARALLEL / pl.core_map if
            # a profile shows one v7x TensorCore idle with the plain hint.
            dimension_semantics=("parallel", "arbitrary"),
            # ~85% of per-core VMEM: ~54 MiB on v7x, ~109 MiB on v5e/v6e.
            vmem_limit_bytes=budget,
        ),
    )(xp, w1p, b1p, w2p, b2p)

    # Strip batch / latent padding (skipped entirely when already aligned).
    if m_pad == B and l_pad == L:
        return out
    return out[:B, :L]


def encoder_reference(x, w1, b1, w2, b2):
    h = jnp.maximum(x @ w1 + b1, 0.0)
    return h @ w2 + b2


if __name__ == "__main__":
    # Small shapes consistent with Encoder(input_size, hidden_size, latent_size).
    B, input_size, hidden_size, latent_size = 8, 32, 64, 16
    dtype = jnp.float32  # cfg.DTYPE analogue; pass bf16 here on v6e/v7x.

    key = jax.random.PRNGKey(0)
    kx, kw1, kb1, kw2, kb2 = jax.random.split(key, 5)

    x = jax.random.normal(kx, (B, input_size), dtype=dtype)

    # PyTorch Linear stores (out, in); we keep the transposed (in, out) layout.
    w1 = jax.random.normal(kw1, (input_size, hidden_size), dtype=dtype) * 0.1
    b1 = jax.random.normal(kb1, (1, hidden_size), dtype=dtype) * 0.1
    w2 = jax.random.normal(kw2, (hidden_size, latent_size), dtype=dtype) * 0.1
    b2 = jax.random.normal(kb2, (1, latent_size), dtype=dtype) * 0.1

    out = encoder_forward(x, w1, b1, w2, b2)
    jax.block_until_ready(out)

    ref = encoder_reference(x, w1, b1, w2, b2)
    assert out.shape == (B, latent_size)
    assert jnp.allclose(out, ref, atol=1e-5, rtol=1e-5)

    print("KERNEL_OK")
</pallas_src>

<mosaic_0001>
module attributes {stable_mosaic.version = 11 : i64} {
  func.func @encoder_kernel(%arg0: i32, %arg1: i32, %arg2: memref<8x32xf32, #tpu.memory_space<vmem>>, %arg3: memref<32x128xf32, #tpu.memory_space<vmem>>, %arg4: memref<1x128xf32, #tpu.memory_space<vmem>>, %arg5: memref<128x128xf32, #tpu.memory_space<vmem>>, %arg6: memref<1x128xf32, #tpu.memory_space<vmem>>, %arg7: memref<8x128xf32, #tpu.memory_space<vmem>>, %arg8: memref<8x128xf32, #tpu.memory_space<vmem>>) attributes {dimension_semantics = [#tpu.dimension_semantics<parallel>, #tpu.dimension_semantics<arbitrary>], iteration_bounds = array<i64: 1, 1>, scalar_prefetch = 0 : i64, scratch_operands = 1 : i64, tpu.core_type = #tpu.core_type<tc>, window_params = [{transform_indices = @transform_0, window_bounds = array<i64: 8, 32>}, {pipeline_mode = #tpu.pipeline_mode<synchronous>, transform_indices = @transform_1, window_bounds = array<i64: 32, 128>}, {pipeline_mode = #tpu.pipeline_mode<synchronous>, transform_indices = @transform_2, window_bounds = array<i64: 1, 128>}, {pipeline_mode = #tpu.pipeline_mode<synchronous>, transform_indices = @transform_3, window_bounds = array<i64: 128, 128>}, {pipeline_mode = #tpu.pipeline_mode<synchronous>, transform_indices = @transform_4, window_bounds = array<i64: 1, 128>}, {transform_indices = @transform_5, window_bounds = array<i64: 8, 128>}]} {
    %c0_i32 = arith.constant 0 : i32
    %0 = arith.cmpi eq, %arg1, %c0_i32 : i32
    %1 = arith.extui %0 : i1 to i32
    %c0_i32_0 = arith.constant 0 : i32
    %2 = arith.cmpi ne, %1, %c0_i32_0 : i32
    scf.if %2 {
      %cst_16 = arith.constant 0.000000e+00 : f32
      %19 = vector.broadcast %cst_16 : f32 to vector<8x128xf32>
      %c0_17 = arith.constant 0 : index
      %c0_18 = arith.constant 0 : index
      %20 = vector.load %arg8[%c0_17, %c0_18] : memref<8x128xf32, #tpu.memory_space<vmem>>, vector<8x128xf32>
      tpu.vector_store %arg8[%c0_17, %c0_18], %19 {strides = array<i32>} : memref<8x128xf32, #tpu.memory_space<vmem>>, vector<8x128xf32>,
    } else {
    }
    %c0 = arith.constant 0 : index
    %c0_1 = arith.constant 0 : index
    %3 = vector.load %arg2[%c0, %c0_1] : memref<8x32xf32, #tpu.memory_space<vmem>>, vector<8x32xf32>
    %c0_2 = arith.constant 0 : index
    %c0_3 = arith.constant 0 : index
    %4 = vector.load %arg3[%c0_2, %c0_3] : memref<32x128xf32, #tpu.memory_space<vmem>>, vector<32x128xf32>
    %cst = arith.constant dense<0.000000e+00> : vector<8x128xf32>
    %5 = tpu.matmul %3, %4, %cst {dimension_numbers = #tpu.dot_dimension_numbers<[1], [0], [0], [1], [0, 0, 1, 1], [], []>} : vector<8x32xf32>, vector<32x128xf32>, vector<8x128xf32> -> vector<8x128xf32>
    %c0_4 = arith.constant 0 : index
    %c0_5 = arith.constant 0 : index
    %6 = vector.load %arg4[%c0_4, %c0_5] : memref<1x128xf32, #tpu.memory_space<vmem>>, vector<1x128xf32>
    %7 = vector.broadcast %6 : vector<1x128xf32> to vector<8x128xf32>
    %8 = arith.addf %5, %7 : vector<8x128xf32>
    %cst_6 = arith.constant 0.000000e+00 : f32
    %9 = vector.broadcast %cst_6 : f32 to vector<8x128xf32>
    %10 = arith.maximumf %8, %9 : vector<8x128xf32>
    %c0_7 = arith.constant 0 : index
    %c0_8 = arith.constant 0 : index
    %11 = vector.load %arg8[%c0_7, %c0_8] : memref<8x128xf32, #tpu.memory_space<vmem>>, vector<8x128xf32>
    %c0_9 = arith.constant 0 : index
    %c0_10 = arith.constant 0 : index
    %12 = vector.load %arg5[%c0_9, %c0_10] : memref<128x128xf32, #tpu.memory_space<vmem>>, vector<128x128xf32>
    %cst_11 = arith.constant dense<0.000000e+00> : vector<8x128xf32>
    %13 = tpu.matmul %10, %12, %cst_11 {dimension_numbers = #tpu.dot_dimension_numbers<[1], [0], [0], [1], [0, 0, 1, 1], [], []>} : vector<8x128xf32>, vector<128x128xf32>, vector<8x128xf32> -> vector<8x128xf32>
    %14 = arith.addf %11, %13 : vector<8x128xf32>
    %c0_12 = arith.constant 0 : index
    %c0_13 = arith.constant 0 : index
    %15 = vector.load %arg8[%c0_12, %c0_13] : memref<8x128xf32, #tpu.memory_space<vmem>>, vector<8x128xf32>
    tpu.vector_store %arg8[%c0_12, %c0_13], %14 {strides = array<i32>} : memref<8x128xf32, #tpu.memory_space<vmem>>, vector<8x128xf32>,
    %c0_i32_14 = arith.constant 0 : i32
    %16 = arith.cmpi eq, %arg1, %c0_i32_14 : i32
    %17 = arith.extui %16 : i1 to i32
    %c0_i32_15 = arith.constant 0 : i32
    %18 = arith.cmpi ne, %17, %c0_i32_15 : i32
    scf.if %18 {
      %c0_16 = arith.constant 0 : index
      %c0_17 = arith.constant 0 : index
      %19 = vector.load %arg8[%c0_16, %c0_17] : memref<8x128xf32, #tpu.memory_space<vmem>>, vector<8x128xf32>
      %c0_18 = arith.constant 0 : index
      %c0_19 = arith.constant 0 : index
      %20 = vector.load %arg6[%c0_18, %c0_19] : memref<1x128xf32, #tpu.memory_space<vmem>>, vector<1x128xf32>
      %21 = vector.broadcast %20 : vector<1x128xf32> to vector<8x128xf32>
      %22 = arith.addf %19, %21 : vector<8x128xf32>
      %c0_20 = arith.constant 0 : index
      %c0_21 = arith.constant 0 : index
      %23 = vector.load %arg7[%c0_20, %c0_21] : memref<8x128xf32, #tpu.memory_space<vmem>>, vector<8x128xf32>
      tpu.vector_store %arg7[%c0_20, %c0_21], %22 {strides = array<i32>} : memref<8x128xf32, #tpu.memory_space<vmem>>, vector<8x128xf32>,
    } else {
    }
    return
  }
  func.func @transform_0(%arg0: i32, %arg1: i32) -> (i32, i32) {
    %c0_i32 = arith.constant 0 : i32
    %c0_i32_0 = arith.constant 0 : i32
    return %arg0, %c0_i32 : i32, i32
  }
  func.func @transform_1(%arg0: i32, %arg1: i32) -> (i32, i32) {
    %c0_i32 = arith.constant 0 : i32
    %c0_i32_0 = arith.constant 0 : i32
    return %c0_i32, %arg1 : i32, i32
  }
  func.func @transform_2(%arg0: i32, %arg1: i32) -> (i32, i32) {
    %c0_i32 = arith.constant 0 : i32
    %c0_i32_0 = arith.constant 0 : i32
    return %c0_i32, %arg1 : i32, i32
  }
  func.func @transform_3(%arg0: i32, %arg1: i32) -> (i32, i32) {
    %c0_i32 = arith.constant 0 : i32
    %c0_i32_0 = arith.constant 0 : i32
    return %arg1, %c0_i32 : i32, i32
  }
  func.func @transform_4(%arg0: i32, %arg1: i32) -> (i32, i32) {
    %c0_i32 = arith.constant 0 : i32
    %c0_i32_0 = arith.constant 0 : i32
    %c0_i32_1 = arith.constant 0 : i32
    return %c0_i32, %c0_i32_0 : i32, i32
  }
  func.func @transform_5(%arg0: i32, %arg1: i32) -> (i32, i32) {
    %c0_i32 = arith.constant 0 : i32
    %c0_i32_0 = arith.constant 0 : i32
    return %arg0, %c0_i32 : i32, i32
  }
}

</mosaic_0001>

<llo_original>
// kernel: encoder_forward.1
$region0: #{encoder_forward.1}
  #allocation0 [shape = 'u32[]', space=smem, size = 0x4, offset = 0x4, fixed_abs, tag = 'smem constant byte address 0x4 - core index']
  #allocation1 [shape = 'u32[144,128]{1,0:T(1,128)}', space=vmem, size = 0x12000, scoped, tag = 'internal scratch']
  #allocation2 [shape = 'f32[8,128]{1,0:T(8,128)}', space=vmem, size = 0x1000, scoped, tag = 'scratch operand']
  %s0 = inlined_call_operand.vmem [shape: f32[8,32], index: 0, kind: input, shape index: {}]
  %s1 = inlined_call_operand.vmem [shape: f32[32,128], index: 1, kind: input, shape index: {}]
  %s2 = inlined_call_operand.vmem [shape: f32[1,128], index: 2, kind: input, shape index: {}]
  %s3 = inlined_call_operand.vmem [shape: f32[128,128], index: 3, kind: input, shape index: {}]
  %s4 = inlined_call_operand.vmem [shape: f32[1,128], index: 4, kind: input, shape index: {}]
  %s5 = inlined_call_operand.hbm [shape: f32[8,128], index: 5, kind: output, shape index: {}]
  %s6 = sld [smem:[#allocation0]]
  $region38: #{encoder_forward.1} parent=0
    _
  %s8 = ssub.s32 1, %s6
  %s9 = scalar_select 0, %s8, %s6
  $region1: #{encoder_forward.1} parent=0
    #allocation3 [shape = 'u8[4096]{0}', space=vmem, size = 0x1000, scoped, tag = 'output window, operand 0, single buffered']
    #allocation4 [shape = 's32[1]{0}', space=sflag, size = 0x4, scoped, tag = 'scoped memory for encoder_forward.1']
    %10 = vsyncpa [#allocation4], 0
    // Predicated region
    $region2: #{encoder_forward.1} parent=1 // pred_check
      _
    $region3: #{encoder_forward.1} parent=1 // pred_check_branch
      %12 = sbr.rel (0) target = $region5
    $region4: #{encoder_forward.1} parent=1 // pred_region
      _
    $region5: #{encoder_forward.1} parent=1 // pred_fallthru
      _
    // Predicated region
    $region6: #{encoder_forward.1} parent=1 // pred_check
      _
    $region7: #{encoder_forward.1} parent=1 // pred_check_branch
      %14 = sbr.rel (0) target = $region9
    $region8: #{encoder_forward.1} parent=1 // pred_region
      _
    $region9: #{encoder_forward.1} parent=1 // pred_fallthru
      _
    // Predicated region
    $region10: #{encoder_forward.1} parent=1 // pred_check
      _
    $region11: #{encoder_forward.1} parent=1 // pred_check_branch
      %16 = sbr.rel (0) target = $region13
    $region12: #{encoder_forward.1} parent=1 // pred_region
      _
    $region13: #{encoder_forward.1} parent=1 // pred_fallthru
      _
    // Predicated region
    $region14: #{encoder_forward.1} parent=1 // pred_check
      _
    $region15: #{encoder_forward.1} parent=1 // pred_check_branch
      %18 = sbr.rel (0) target = $region17
    $region16: #{encoder_forward.1} parent=1 // pred_region
      _
    $region17: #{encoder_forward.1} parent=1 // pred_fallthru
      _
    // Predicated region
    $region18: #{encoder_forward.1} parent=1 // pred_check
      _
    $region19: #{encoder_forward.1} parent=1 // pred_check_branch
      %20 = sbr.rel (0) target = $region21
    $region20: #{encoder_forward.1} parent=1 // pred_region
      _
    $region21: #{encoder_forward.1} parent=1 // pred_fallthru
      _
    %p21 = scmp.eq.s32.totalorder 0, 0
    // Predicated region
    $region22: #{encoder_forward.1} parent=1 // pred_check
      %p22 = pneg %p21
    $region23: #{encoder_forward.1} parent=1 // pred_check_branch
      %24 = sbr.rel (%p22) target = $region25
    $region24: #{encoder_forward.1} parent=1 // pred_region
      %25 = vst [vmem:[#allocation2] sm:$0xff] 0.0
    $region25: #{encoder_forward.1} parent=1 // pred_fallthru
      _
    %v26 = vld [vmem:[%s0] sm:$0xff]
    %v27 = vld [vmem:[%s1] sm:$0xff]
    %v28 = vld [vmem:[%s1 + $0x8] sm:$0xff]
    %v29 = vld [vmem:[%s1 + $0x10] sm:$0xff]
    %v30 = vld [vmem:[%s1 + $0x18] sm:$0xff]
    %v31 = vld [vmem:[%s2] sm:$0x1]
    %v33 = vlaneseq
    %v34 = vshrl.u32 %v33, 7
    %v35 = vsub.s32 0, %v34
    %v36 = vrot.slane %v31, %v35
    %vm38 = vcmask 261120
    %v40 = vsel %vm38, %v26, 0
    %42 = vmatprep.subr.mxu0 0.0
    %43 = vmatpush1.msra.mxu0 %v27
    %44 = vmatprep.subr.mxu0 0.0
    %45 = vmatpush1.msra.mxu0 %v28
    %46 = vmatprep.subr.mxu0 0.0
    %47 = vmatpush1.msra.mxu0 %v29
    %48 = vmatprep.subr.mxu0 0.0
    %49 = vmatpush1.msra.mxu0 %v30
    %50 = vmatprep.subr.mxu0 0.0
    %51 = vmatpush1.msra.mxu0 0.0
    %52 = vmatprep.subr.mxu0 0.0
    %53 = vmatpush1.msra.mxu0 0.0
    %54 = vmatprep.subr.mxu0 0.0
    %55 = vmatpush1.msra.mxu0 0.0
    %56 = vmatprep.subr.mxu0 0.0
    %57 = vmatpush1.msra.mxu0 0.0
    %58 = vmatprep.subr.mxu0 0.0
    %59 = vmatpush1.msra.mxu0 0.0
    %60 = vmatprep.subr.mxu0 0.0
    %61 = vmatpush1.msra.mxu0 0.0
    %62 = vmatprep.subr.mxu0 0.0
    %63 = vmatpush1.msra.mxu0 0.0
    %64 = vmatprep.subr.mxu0 0.0
    %65 = vmatpush1.msra.mxu0 0.0
    %66 = vmatprep.subr.mxu0 0.0
    %67 = vmatpush1.msra.mxu0 0.0
    %68 = vmatprep.subr.mxu0 0.0
    %69 = vmatpush1.msra.mxu0 0.0
    %70 = vmatprep.subr.mxu0 0.0
    %71 = vmatpush1.msra.mxu0 0.0
    %72 = vmatprep.subr.mxu0 0.0
    %73 = vmatpush1.msra.mxu0 0.0
    %74 = vmatprep.subr.mxu0 0.0
    %75 = vmatpush1.msra.mxu0 0.0
    %76 = vmatprep.subr.mxu0 0.0
    %77 = vmatpush1.msra.mxu0 0.0
    %78 = vmatprep.subr.mxu0 0.0
    %79 = vmatpush1.msra.mxu0 0.0
    %80 = vmatprep.subr.mxu0 0.0
    %81 = vmatpush1.msra.mxu0 0.0
    %82 = vmatprep.subr.mxu0 0.0
    %83 = vmatpush1.msra.mxu0 0.0
    %84 = vmatprep.subr.mxu0 0.0
    %85 = vmatpush1.msra.mxu0 0.0
    %86 = vmatprep.subr.mxu0 0.0
    %87 = vmatpush1.msra.mxu0 0.0
    %88 = vmatprep.subr.mxu0 0.0
    %89 = vmatpush1.msra.mxu0 0.0
    %90 = vmatprep.subr.mxu0 0.0
    %91 = vmatpush1.msra.mxu0 0.0
    %92 = vmatprep.subr.mxu0 0.0
    %93 = vmatpush1.msra.mxu0 0.0
    %94 = vmatprep.subr.mxu0 0.0
    %95 = vmatpush1.msra.mxu0 0.0
    %96 = vmatprep.subr.mxu0 0.0
    %97 = vmatpush1.msra.mxu0 0.0
    %98 = vmatprep.subr.mxu0 0.0
    %99 = vmatpush1.msra.mxu0 0.0
    %100 = vmatprep.subr.mxu0 0.0
    %101 = vmatpush1.msra.mxu0 0.0
    %102 = vmatprep.subr.mxu0 0.0
    %103 = vmatpush1.msra.mxu0 0.0
    %104 = vmatprep.subr.mxu0 0.0
    %105 = vmatpush1.msra.mxu0 0.0
    %106 = vmatprep.mubr.f32.mxu0 0.0
    %107 = vmatmul.mubr.f32.gmra.mrb[0].mxu0 %v40
    %v108 = vpop.f32.mrb[0].mxu0
    %v109 = vadd.f32 %v36, %v108
    %v110 = vpop.f32.mrb[0].mxu0
    %111 = vdwg.mxu0
    %v112 = vmax.f32 %v109, 0.0
    %v113 = vld [vmem:[#allocation2] sm:$0xff]
    %v114 = vld [vmem:[%s3] sm:$0xff]
    %v115 = vld [vmem:[%s3 + $0x8] sm:$0xff]
    %v116 = vld [vmem:[%s3 + $0x10] sm:$0xff]
    %v117 = vld [vmem:[%s3 + $0x18] sm:$0xff]
    %v118 = vld [vmem:[%s3 + $0x20] sm:$0xff]
    %v119 = vld [vmem:[%s3 + $0x28] sm:$0xff]
    %v120 = vld [vmem:[%s3 + $0x30] sm:$0xff]
    %v121 = vld [vmem:[%s3 + $0x38] sm:$0xff]
    %v122 = vld [vmem:[%s3 + $0x40] sm:$0xff]
    %v123 = vld [vmem:[%s3 + $0x48] sm:$0xff]
    %v124 = vld [vmem:[%s3 + $0x50] sm:$0xff]
    %v125 = vld [vmem:[%s3 + $0x58] sm:$0xff]
    %v126 = vld [vmem:[%s3 + $0x60] sm:$0xff]
    %v127 = vld [vmem:[%s3 + $0x68] sm:$0xff]
    %v128 = vld [vmem:[%s3 + $0x70] sm:$0xff]
    %v129 = vld [vmem:[%s3 + $0x78] sm:$0xff]
    %130 = vmatprep.subr.mxu0 0.0
    %131 = vmatpush1.msra.mxu0 %v114
    %132 = vmatprep.subr.mxu0 0.0
    %133 = vmatpush1.msra.mxu0 %v115
    %134 = vmatprep.subr.mxu0 0.0
    %135 = vmatpush1.msra.mxu0 %v116
    %136 = vmatprep.subr.mxu0 0.0
    %137 = vmatpush1.msra.mxu0 %v117
    %138 = vmatprep.subr.mxu0 0.0
    %139 = vmatpush1.msra.mxu0 %v118
    %140 = vmatprep.subr.mxu0 0.0
    %141 = vmatpush1.msra.mxu0 %v119
    %142 = vmatprep.subr.mxu0 0.0
    %143 = vmatpush1.msra.mxu0 %v120
    %144 = vmatprep.subr.mxu0 0.0
    %145 = vmatpush1.msra.mxu0 %v121
    %146 = vmatprep.subr.mxu0 0.0
    %147 = vmatpush1.msra.mxu0 %v122
    %148 = vmatprep.subr.mxu0 0.0
    %149 = vmatpush1.msra.mxu0 %v123
    %150 = vmatprep.subr.mxu0 0.0
    %151 = vmatpush1.msra.mxu0 %v124
    %152 = vmatprep.subr.mxu0 0.0
    %153 = vmatpush1.msra.mxu0 %v125
    %154 = vmatprep.subr.mxu0 0.0
    %155 = vmatpush1.msra.mxu0 %v126
    %156 = vmatprep.subr.mxu0 0.0
    %157 = vmatpush1.msra.mxu0 %v127
    %158 = vmatprep.subr.mxu0 0.0
    %159 = vmatpush1.msra.mxu0 %v128
    %160 = vmatprep.subr.mxu0 0.0
    %161 = vmatpush1.msra.mxu0 %v129
    %162 = vmatprep.subr.mxu0 0.0
    %163 = vmatpush1.msra.mxu0 0.0
    %164 = vmatprep.subr.mxu0 0.0
    %165 = vmatpush1.msra.mxu0 0.0
    %166 = vmatprep.subr.mxu0 0.0
    %167 = vmatpush1.msra.mxu0 0.0
    %168 = vmatprep.subr.mxu0 0.0
    %169 = vmatpush1.msra.mxu0 0.0
    %170 = vmatprep.subr.mxu0 0.0
    %171 = vmatpush1.msra.mxu0 0.0
    %172 = vmatprep.subr.mxu0 0.0
    %173 = vmatpush1.msra.mxu0 0.0
    %174 = vmatprep.subr.mxu0 0.0
    %175 = vmatpush1.msra.mxu0 0.0
    %176 = vmatprep.subr.mxu0 0.0
    %177 = vmatpush1.msra.mxu0 0.0
    %178 = vmatprep.subr.mxu0 0.0
    %179 = vmatpush1.msra.mxu0 0.0
    %180 = vmatprep.subr.mxu0 0.0
    %181 = vmatpush1.msra.mxu0 0.0
    %182 = vmatprep.subr.mxu0 0.0
    %183 = vmatpush1.msra.mxu0 0.0
    %184 = vmatprep.subr.mxu0 0.0
    %185 = vmatpush1.msra.mxu0 0.0
    %186 = vmatprep.subr.mxu0 0.0
    %187 = vmatpush1.msra.mxu0 0.0
    %188 = vmatprep.subr.mxu0 0.0
    %189 = vmatpush1.msra.mxu0 0.0
    %190 = vmatprep.subr.mxu0 0.0
    %191 = vmatpush1.msra.mxu0 0.0
    %192 = vmatprep.subr.mxu0 0.0
    %193 = vmatpush1.msra.mxu0 0.0
    %194 = vmatprep.mubr.f32.mxu0 0.0
    %195 = vmatmul.mubr.f32.gmra.mrb[0].mxu0 %v112
    %v196 = vpop.f32.mrb[0].mxu0
    %v197 = vadd.f32 0.0, %v196
    %v198 = vpop.f32.mrb[0].mxu0
    %199 = vdwg.mxu0
    %v200 = vadd.f32 %v113, %v197
    %201 = vst [vmem:[#allocation2] sm:$0xff] %v200
    // Predicated region
    $region26: #{encoder_forward.1} parent=1 // pred_check
      %p202 = pneg %p21
    $region27: #{encoder_forward.1} parent=1 // pred_check_branch
      %204 = sbr.rel (%p202) target = $region29
    $region28: #{encoder_forward.1} parent=1 // pred_region
      %v205 = vld [vmem:[#allocation2] sm:$0xff]
      %v206 = vld [vmem:[%s4] sm:$0x1]
      %v208 = vlaneseq
      %v209 = vshrl.u32 %v208, 7
      %v210 = vsub.s32 0, %v209
      %v211 = vrot.slane %v206, %v210
      %v213 = vadd.f32 %v205, %v211
      %214 = vst [vmem:[#allocation3] sm:$0xff] %v213
    $region29: #{encoder_forward.1} parent=1 // pred_fallthru
      _
    // Predicated region
    $region30: #{encoder_forward.1} parent=1 // pred_check
      _
    $region31: #{encoder_forward.1} parent=1 // pred_check_branch
      %216 = sbr.rel (0) target = $region33
    $region32: #{encoder_forward.1} parent=1 // pred_region
      %s218 = ssub.s32 128, 128
      %219 = vsyncadd [#allocation4], %s218
      %s221 = sshll.u32 [#allocation3], 4
      %s222 = int_to_ptr.vmem [resolvable:$true] %s221
      %224 = dma.vmem_to_hbm [thread:$0]  %s222, 128, %s5, [#allocation4]
    $region33: #{encoder_forward.1} parent=1 // pred_fallthru
      _
    // Predicated region
    $region34: #{encoder_forward.1} parent=1 // pred_check
      _
    $region35: #{encoder_forward.1} parent=1 // pred_check_branch
      %226 = sbr.rel (0) target = $region37
    $region36: #{encoder_forward.1} parent=1 // pred_region
      %227 = dma.done [#allocation4], 128
    $region37: #{encoder_forward.1} parent=1 // pred_fallthru
      _
    %228 = vsyncpa [#allocation4], 1

</llo_original>
